<compile_context>
chip_gen: v7x
topology: tpu7x:2x2x1
jax: 0.10.0
libtpu: 0.0.40
codegen_flags: <defaults>
</compile_context>

<pallas_src>
import functools

import jax
import jax.numpy as jnp
from jax.experimental import pallas as pl
from jax.experimental.pallas import tpu as pltpu


def _pow_nonneg(base, gamma):
    """(1 - p)**gamma with gamma a static Python float.

    Integer gamma (incl. the default 2.0) is specialized to repeated multiplies
    (no transcendentals).  Non-integer gamma falls back to exp(g*log(x)) with a
    guard so pow(0, g) == 0 for g > 0 (matches torch.pow on [0, 1])."""
    g = float(gamma)
    if g == int(g) and 0 <= int(g) <= 8:
        gi = int(g)
        if gi == 0:
            return jnp.ones_like(base)
        w = base
        for _ in range(gi - 1):
            w = w * base
        return w
    pos = base > 0.0
    safe = jnp.where(pos, base, 1.0)
    return jnp.where(pos, jnp.exp(g * jnp.log(safe)), 0.0)


def _focal_loss_kernel(logits_ref, target_ref, out_ref, *, alpha, gamma, smooth,
                       fuse, hw, tile):
    x = logits_ref[...].astype(jnp.float32)          # (C, T) classes x pixels
    t = target_ref[...].astype(jnp.int32)            # (1, T) (int8/int32 in HBM)

    # log-softmax / softmax over the class (sublane) axis.
    m = jnp.max(x, axis=0, keepdims=True)            # (1, T)
    shifted = x - m                                   # (C, T), <= 0
    ex = jnp.exp(shifted)                             # (C, T)
    denom = jnp.sum(ex, axis=0, keepdims=True)        # (1, T), >= 1

    # EUP approximate reciprocal + one Newton-Raphson step -> ~f32 accuracy.
    inv_denom = pl.reciprocal(denom, approx=True)
    inv_denom = inv_denom * (2.0 - denom * inv_denom)
    log_denom = jnp.log(denom)                        # (1, T)

    cls = jax.lax.broadcasted_iota(jnp.int32, x.shape, dimension=0)  # (C, T)

    if not smooth:
        # Only the target class contributes; select its column with a masked
        # sublane reduction instead of computing focal for all C classes.
        mask = (cls == t).astype(jnp.float32)                           # (C, T)
        shifted_t = jnp.sum(mask * shifted, axis=0, keepdims=True)      # (1, T)
        ex_t = jnp.sum(mask * ex, axis=0, keepdims=True)                # (1, T)
        p_t = ex_t * inv_denom
        log_p_t = shifted_t - log_denom
        weight = _pow_nonneg(1.0 - p_t, gamma)
        loss = (-alpha) * weight * log_p_t                              # (1, T)
    else:
        # Smoothed one-hot: fixed conv1d kernel [0.2, 0.9, 0.2], padding=1
        # => closed form with shifted comparisons; contract over classes.
        p = ex * inv_denom                                              # (C, T)
        log_p = shifted - log_denom                                     # (C, T)
        weight = _pow_nonneg(1.0 - p, gamma)
        focal = (-alpha) * weight * log_p
        oh = (0.9 * (cls == t).astype(jnp.float32)
              + 0.2 * (cls == (t - 1)).astype(jnp.float32)
              + 0.2 * (cls == (t + 1)).astype(jnp.float32))
        loss = jnp.sum(oh * focal, axis=0, keepdims=True)               # (1, T)

    if not fuse:
        # reduction='none': lane-dense (1, tile) slab straight to HBM.
        out_ref[...] = loss
    else:
        # reduction='mean'/'sum': fuse the spatial reduction.  Output block is
        # a per-batch (1,1) accumulator resident across the (arbitrary) pixel
        # grid axis -> no full-loss writeback / re-read.
        j = pl.program_id(1)
        if hw % tile != 0:
            # Mask the ragged tail columns of the last tile (static check:
            # zero cost when the pixel count is tile-aligned).
            lane = jax.lax.broadcasted_iota(jnp.int32, loss.shape, dimension=1)
            valid = (j * tile + lane) < hw
            loss = jnp.where(valid, loss, 0.0)
        partial = jnp.sum(loss, axis=1, keepdims=True)                  # (1, 1)

        @pl.when(j == 0)
        def _():
            out_ref[...] = partial

        @pl.when(j != 0)
        def _():
            out_ref[...] = out_ref[...] + partial


def _pick_tile(hw_ceil, n_batch, c, logit_bytes, tgt_bytes, out_bytes, max_tile):
    """Lane tile: as big as the VMEM budget / max_tile allow, but keep >= ~8
    total grid steps so the auto-pipeline amortizes and both v7x TCs stay busy."""
    lane = 128
    # Double-buffered per-lane stream bytes (logits + target + loss out).
    per_lane = 2 * (c * logit_bytes + tgt_bytes + out_bytes)
    budget = 20 * 1024 * 1024          # fits every generation with 32MiB scoped
    vmem_cap = max(lane, (budget // per_lane) // lane * lane)
    tile = min(hw_ceil, int(max_tile), vmem_cap)
    tile = max(lane, (tile // lane) * lane)
    min_steps = 8
    if n_batch * pl.cdiv(hw_ceil, tile) < min_steps and tile > lane:
        per_batch = pl.cdiv(min_steps, n_batch)
        tile = max(lane, min(tile, pl.cdiv(pl.cdiv(hw_ceil, per_batch), lane) * lane))
    return tile


def focal_loss(logits, target, *, alpha, gamma=2.0, reduction="none",
               smooth_target=False, max_tile=131072):
    """logits: (N, C, *spatial) float; target: (N, *spatial) int.

    For best HBM traffic, callers should store `target` as int8 when C <= 127
    and may feed bf16 logits; both are consumed natively (upcast in-kernel)."""
    if reduction not in ("none", "mean", "sum"):
        raise NotImplementedError(f"Invalid reduction mode: {reduction}")

    N, C = logits.shape[0], logits.shape[1]
    spatial = logits.shape[2:]
    HW = 1
    for s in spatial:
        HW *= int(s)

    # Free reshapes only -- no NCHW->NHWC transpose, no jnp.pad copy, keep the
    # input dtypes in HBM (bf16 logits / int8 targets stay narrow; upcast
    # happens in-kernel after the DMA).
    x = logits.reshape(N, C, HW)
    t = target.reshape(N, 1, HW)
    if t.dtype not in (jnp.int8, jnp.int32):
        t = t.astype(jnp.int32)

    lane = 128
    HW_ceil = pl.cdiv(HW, lane) * lane
    fuse = reduction in ("mean", "sum")

    tile = _pick_tile(
        HW_ceil, N, C,
        jnp.dtype(x.dtype).itemsize,
        jnp.dtype(t.dtype).itemsize,
        4 if not fuse else 0,
        max_tile,
    )
    grid_hw = pl.cdiv(HW, tile)

    kernel = functools.partial(
        _focal_loss_kernel,
        alpha=float(alpha), gamma=float(gamma), smooth=bool(smooth_target),
        fuse=fuse, hw=HW, tile=tile,
    )

    in_specs = [
        pl.BlockSpec((None, C, tile), lambda n, j: (n, 0, j)),
        pl.BlockSpec((None, 1, tile), lambda n, j: (n, 0, j)),
    ]

    if fuse:
        # One (1,1) partial per batch, accumulated across the pixel axis.
        out_shape = jax.ShapeDtypeStruct((N, 1, 1), jnp.float32)
        out_specs = pl.BlockSpec((None, 1, 1), lambda n, j: (n, 0, 0))
        dims = ("parallel", "arbitrary")
    else:
        # Lane-dense per-pixel loss; output allocation rounded up to the tile
        # so every output block write is fully in-bounds (sliced back below).
        HW_out = grid_hw * tile
        out_shape = jax.ShapeDtypeStruct((N, 1, HW_out), jnp.float32)
        out_specs = pl.BlockSpec((None, 1, tile), lambda n, j: (n, 0, j))
        dims = ("parallel", "parallel")

    out = pl.pallas_call(
        kernel,
        out_shape=out_shape,
        grid_spec=pltpu.PrefetchScalarGridSpec(
            num_scalar_prefetch=0,
            grid=(N, grid_hw),
            in_specs=in_specs,
            out_specs=out_specs,
        ),
        compiler_params=pltpu.CompilerParams(
            dimension_semantics=dims,
            # Explicit so v5e's 16 MiB scoped default never bites; <= physical
            # VMEM on every generation (v7x: 64 MiB/TC).
            vmem_limit_bytes=32 * 1024 * 1024,
        ),
    )(x, t)

    if reduction == "none":
        return out[:, 0, :HW].reshape((N,) + spatial)
    total = jnp.sum(out)
    if reduction == "mean":
        return total / (N * HW)
    return total


def _focal_loss_ref(logits, target, *, alpha, gamma=2.0, reduction="none",
                    smooth_target=False):
    """Pure-JAX reference matching the PyTorch forward."""
    D = logits.shape[1]
    p = jax.nn.softmax(logits, axis=1)
    log_p = jax.nn.log_softmax(logits, axis=1)
    oh = jax.nn.one_hot(target, D, dtype=logits.dtype)        # (N, H, W, D)
    if smooth_target:
        ohp = jnp.pad(oh, ((0, 0), (0, 0), (0, 0), (1, 1)))
        oh = 0.2 * ohp[..., :-2] + 0.9 * ohp[..., 1:-1] + 0.2 * ohp[..., 2:]
    oh = jnp.moveaxis(oh, -1, 1)                               # (N, D, H, W)
    focal = -alpha * jnp.power(1.0 - p, gamma) * log_p
    loss = jnp.einsum("bc...,bc...->b...", oh, focal)
    if reduction == "none":
        return loss
    if reduction == "mean":
        return jnp.mean(loss)
    return jnp.sum(loss)


if __name__ == "__main__":
    key = jax.random.PRNGKey(0)
    k1, k2 = jax.random.split(key)

    N, C, H, W = 2, 5, 16, 16
    logits = jax.random.normal(k1, (N, C, H, W), dtype=jnp.float32)
    # Caller-side int8 targets (C <= 127) exercise the narrow target stream.
    target = jax.random.randint(k2, (N, H, W), 0, C, dtype=jnp.int32).astype(jnp.int8)

    alpha, gamma = 0.5, 2.0

    # reduction='none' (module default), non-smooth target-select fast path
    out = jax.block_until_ready(
        focal_loss(logits, target, alpha=alpha, gamma=gamma, reduction="none"))
    ref = _focal_loss_ref(logits, target, alpha=alpha, gamma=gamma,
                          reduction="none")
    assert out.shape == (N, H, W)
    assert jnp.allclose(out, ref, rtol=1e-5, atol=1e-5)

    # reduction='mean' with smooth_target=True (full-class path, fused reduce)
    out_mean = jax.block_until_ready(
        focal_loss(logits, target, alpha=alpha, gamma=gamma, reduction="mean",
                   smooth_target=True))
    ref_mean = _focal_loss_ref(logits, target, alpha=alpha, gamma=gamma,
                               reduction="mean", smooth_target=True)
    assert jnp.allclose(out_mean, ref_mean, rtol=1e-5, atol=1e-5)

    # reduction='sum', non-smooth (fused reduce + target-select fast path)
    out_sum = jax.block_until_ready(
        focal_loss(logits, target, alpha=alpha, gamma=gamma, reduction="sum"))
    ref_sum = _focal_loss_ref(logits, target, alpha=alpha, gamma=gamma,
                              reduction="sum")
    assert jnp.allclose(out_sum, ref_sum, rtol=1e-5, atol=1e-5)

    print("KERNEL_OK")
</pallas_src>

<mosaic_0001>
module attributes {stable_mosaic.version = 11 : i64} {
  func.func @_focal_loss_kernel(%arg0: i32, %arg1: i32, %arg2: memref<1x5x128xf32, #tpu.memory_space<vmem>>, %arg3: memref<1x1x128xi8, #tpu.memory_space<vmem>>, %arg4: memref<1x1x128xf32, #tpu.memory_space<vmem>>) attributes {dimension_semantics = [#tpu.dimension_semantics<parallel>, #tpu.dimension_semantics<parallel>], iteration_bounds = array<i64: 2, 2>, scalar_prefetch = 0 : i64, scratch_operands = 0 : i64, tpu.core_type = #tpu.core_type<tc>, window_params = [{transform_indices = @transform_0, window_bounds = array<i64: 1, 5, 128>}, {transform_indices = @transform_1, window_bounds = array<i64: 1, 1, 128>}, {transform_indices = @transform_2, window_bounds = array<i64: 1, 1, 128>}]} {
    %c0 = arith.constant 0 : index
    %c0_0 = arith.constant 0 : index
    %c0_1 = arith.constant 0 : index
    %0 = vector.load %arg2[%c0, %c0_0, %c0_1] : memref<1x5x128xf32, #tpu.memory_space<vmem>>, vector<1x5x128xf32>
    %1 = vector.shape_cast %0 : vector<1x5x128xf32> to vector<5x128xf32>
    %c0_2 = arith.constant 0 : index
    %c0_3 = arith.constant 0 : index
    %c0_4 = arith.constant 0 : index
    %2 = vector.load %arg3[%c0_2, %c0_3, %c0_4] : memref<1x1x128xi8, #tpu.memory_space<vmem>>, vector<1x1x128xi8>
    %3 = vector.shape_cast %2 : vector<1x1x128xi8> to vector<1x128xi8>
    %4 = arith.extsi %3 : vector<1x128xi8> to vector<1x128xi32>
    %cst = arith.constant dense<0xFF800000> : vector<128xf32>
    %5 = vector.multi_reduction <maximumf>, %1, %cst [0] : vector<5x128xf32> to vector<128xf32>
    %6 = vector.shape_cast %5 : vector<128xf32> to vector<1x128xf32>
    %7 = vector.broadcast %6 : vector<1x128xf32> to vector<5x128xf32>
    %8 = arith.subf %1, %7 : vector<5x128xf32>
    %9 = math.exp %8 : vector<5x128xf32>
    %cst_5 = arith.constant dense<0.000000e+00> : vector<128xf32>
    %10 = vector.multi_reduction <add>, %9, %cst_5 [0] : vector<5x128xf32> to vector<128xf32>
    %11 = vector.shape_cast %10 : vector<128xf32> to vector<1x128xf32>
    %12 = tpu.reciprocal %11 {approx = true} : vector<1x128xf32> -> vector<1x128xf32>
    %13 = arith.mulf %11, %12 : vector<1x128xf32>
    %cst_6 = arith.constant 2.000000e+00 : f32
    %14 = vector.broadcast %cst_6 : f32 to vector<1x128xf32>
    %15 = arith.subf %14, %13 : vector<1x128xf32>
    %16 = arith.mulf %12, %15 : vector<1x128xf32>
    %17 = math.log %11 : vector<1x128xf32>
    %18 = tpu.iota {dimensions = array<i32: 0>} : vector<5x128xi32>
    %19 = vector.broadcast %4 : vector<1x128xi32> to vector<5x128xi32>
    %20 = arith.cmpi eq, %18, %19 : vector<5x128xi32>
    %21 = arith.extui %20 : vector<5x128xi1> to vector<5x128xi32>
    %22 = arith.sitofp %21 : vector<5x128xi32> to vector<5x128xf32>
    %23 = arith.mulf %22, %8 : vector<5x128xf32>
    %cst_7 = arith.constant dense<0.000000e+00> : vector<128xf32>
    %24 = vector.multi_reduction <add>, %23, %cst_7 [0] : vector<5x128xf32> to vector<128xf32>
    %25 = vector.shape_cast %24 : vector<128xf32> to vector<1x128xf32>
    %26 = arith.mulf %22, %9 : vector<5x128xf32>
    %cst_8 = arith.constant dense<0.000000e+00> : vector<128xf32>
    %27 = vector.multi_reduction <add>, %26, %cst_8 [0] : vector<5x128xf32> to vector<128xf32>
    %28 = vector.shape_cast %27 : vector<128xf32> to vector<1x128xf32>
    %29 = arith.mulf %28, %16 : vector<1x128xf32>
    %30 = arith.subf %25, %17 : vector<1x128xf32>
    %cst_9 = arith.constant 1.000000e+00 : f32
    %31 = vector.broadcast %cst_9 : f32 to vector<1x128xf32>
    %32 = arith.subf %31, %29 : vector<1x128xf32>
    %33 = arith.mulf %32, %32 : vector<1x128xf32>
    %cst_10 = arith.constant -5.000000e-01 : f32
    %34 = vector.broadcast %cst_10 : f32 to vector<1x128xf32>
    %35 = arith.mulf %34, %33 : vector<1x128xf32>
    %36 = arith.mulf %35, %30 : vector<1x128xf32>
    %c0_11 = arith.constant 0 : index
    %c0_12 = arith.constant 0 : index
    %c0_13 = arith.constant 0 : index
    %37 = vector.load %arg4[%c0_11, %c0_12, %c0_13] : memref<1x1x128xf32, #tpu.memory_space<vmem>>, vector<1x1x128xf32>
    %38 = vector.shape_cast %37 : vector<1x1x128xf32> to vector<1x128xf32>
    %39 = vector.shape_cast %36 : vector<1x128xf32> to vector<1x1x128xf32>
    tpu.vector_store %arg4[%c0_11, %c0_12, %c0_13], %39 {strides = array<i32>} : memref<1x1x128xf32, #tpu.memory_space<vmem>>, vector<1x1x128xf32>,
    return
  }
  func.func @transform_0(%arg0: i32, %arg1: i32) -> (i32, i32, i32) {
    %c0_i32 = arith.constant 0 : i32
    %c0_i32_0 = arith.constant 0 : i32
    return %arg0, %c0_i32, %arg1 : i32, i32, i32
  }
  func.func @transform_1(%arg0: i32, %arg1: i32) -> (i32, i32, i32) {
    %c0_i32 = arith.constant 0 : i32
    %c0_i32_0 = arith.constant 0 : i32
    return %arg0, %c0_i32, %arg1 : i32, i32, i32
  }
  func.func @transform_2(%arg0: i32, %arg1: i32) -> (i32, i32, i32) {
    %c0_i32 = arith.constant 0 : i32
    %c0_i32_0 = arith.constant 0 : i32
    return %arg0, %c0_i32, %arg1 : i32, i32, i32
  }
}

</mosaic_0001>

<llo_original>
// kernel: tpu_custom_call.1
$region0: #{tpu_custom_call.1}
  #allocation0 [shape = 'u32[]', space=smem, size = 0x4, offset = 0x4, fixed_abs, tag = 'smem constant byte address 0x4 - core index']
  #allocation1 [shape = 'u32[144,128]{1,0:T(1,128)}', space=vmem, size = 0x12000, scoped, tag = 'internal scratch']
  %s0 = inlined_call_operand.vmem [shape: f32[2,5,256], index: 0, kind: input, shape index: {}]
  %s1 = inlined_call_operand.vmem [shape: s8[2,1,256], index: 1, kind: input, shape index: {}]
  %s2 = inlined_call_operand.hbm [shape: f32[2,1,256], index: 2, kind: output, shape index: {}]
  %s3 = sld [smem:[#allocation0]]
  $region41: #{tpu_custom_call.1} parent=0
    _
  %s5 = ssub.s32 1, %s3
  %s6 = scalar_select 0, %s5, %s3
  $region1: #{tpu_custom_call.1} parent=0
    #allocation2 [shape = 'u8[1024]{0}', space=vmem, size = 0x400, scoped, tag = 'output window, operand 0']
    #allocation3 [shape = 's32[2]{0}', space=sflag, size = 0x8, scoped, tag = 'scoped memory for tpu_custom_call.1']
    %7 = vsyncpa [#allocation3], 0
    %s8 = scalar_lea.sflag [#allocation3], 1
    %9 = vsyncpa %s8, 0
    loop: start=0, step=1, limit=6
    $region2: #{tpu_custom_call.1} parent=1 // loop_pre_header
      _
    $region3: #{tpu_custom_call.1} parent=1 // loop_header
      %s11 = sphi 0, %s15
      %p12 = scmp.ge.s32.totalorder %s11, 6
      %s18 = sphi 0, %s30
      %s19 = sphi 0, %s26
      %s20 = sphi 0, %s18
      %s21 = sphi 0, %s19
      %s22 = sphi 0, %s20
      %s23 = sphi 0, %s21
      %s35 = sphi 0, %s37
      %s38 = sphi 0, %s35
      %s39 = sphi 0, %s38
      %s55 = sphi 0, %s39
      %s63 = sphi 0, %s65
      %s66 = sphi 0, %s63
      %s67 = sphi 0, %s66
      %s83 = sphi 0, %s67
      %s91 = sphi 0, %s93
      %s94 = sphi 0, %s91
      %s95 = sphi 0, %s94
      %s111 = sphi 0, %s95
    $region4: #{tpu_custom_call.1} parent=1 // loop_header_branch
      %14 = sbr.rel (%p12) target = $region8
    $region5: #{tpu_custom_call.1} parent=1 // loop_body
      %s16 = ssub.s32 %s11, 1
      %s17 = ssub.s32 %s11, 2
      %s24 = sadd.s32 1, %s19
      %p25 = scmp.ge.s32.totalorder %s24, 2
      %s26 = scalar_select %p25, 0, %s24
      %s27 = sadd.s32 1, %s18
      %s28 = scalar_select %p25, %s27, %s18
      %p29 = scmp.ge.s32.totalorder %s28, 2
      %s30 = scalar_select %p29, 0, %s28
      %s31 = ssub.s32 %s18, %s30
      %s32 = ssub.s32 %s19, %s26
      %s33 = sor.u32 %s31, %s32
      %p34 = scmp.eq.s32.totalorder %s33, 0
      %s36 = sadd.s32 %s35, 1
      %s37 = scalar_select %p34, %s35, %s36
      %p40 = pneg %p34
      %p41 = scmp.eq.s32.totalorder %s11, 3
      %p42 = por %p40, %p41
      %p43 = scmp.ne.s32.totalorder %s35, %s38
      %p44 = scmp.eq.s32.totalorder %s11, 0
      %p45 = por %p43, %p44
      %p46 = scmp.ne.s32.totalorder %s35, %s38
      %p47 = scmp.eq.s32.totalorder %s16, 3
      %p48 = por %p46, %p47
      %p49 = scmp.ne.s32.totalorder %s38, %s39
      %p50 = scmp.eq.s32.totalorder %s16, 0
      %p51 = por %p49, %p50
      %p52 = scmp.ne.s32.totalorder %s38, %s39
      %p53 = scmp.eq.s32.totalorder %s17, 3
      %p54 = por %p52, %p53
      %p56 = scmp.ne.s32.totalorder %s39, %s55
      %p57 = scmp.eq.s32.totalorder %s17, 0
      %p58 = por %p56, %p57
      %s59 = ssub.s32 %s18, %s30
      %s60 = ssub.s32 %s19, %s26
      %s61 = sor.u32 %s59, %s60
      %p62 = scmp.eq.s32.totalorder %s61, 0
      %s64 = sadd.s32 %s63, 1
      %s65 = scalar_select %p62, %s63, %s64
      %p68 = pneg %p62
      %p69 = scmp.eq.s32.totalorder %s11, 3
      %p70 = por %p68, %p69
      %p71 = scmp.ne.s32.totalorder %s63, %s66
      %p72 = scmp.eq.s32.totalorder %s11, 0
      %p73 = por %p71, %p72
      %p74 = scmp.ne.s32.totalorder %s63, %s66
      %p75 = scmp.eq.s32.totalorder %s16, 3
      %p76 = por %p74, %p75
      %p77 = scmp.ne.s32.totalorder %s66, %s67
      %p78 = scmp.eq.s32.totalorder %s16, 0
      %p79 = por %p77, %p78
      %p80 = scmp.ne.s32.totalorder %s66, %s67
      %p81 = scmp.eq.s32.totalorder %s17, 3
      %p82 = por %p80, %p81
      %p84 = scmp.ne.s32.totalorder %s67, %s83
      %p85 = scmp.eq.s32.totalorder %s17, 0
      %p86 = por %p84, %p85
      %s87 = ssub.s32 %s18, %s30
      %s88 = ssub.s32 %s19, %s26
      %s89 = sor.u32 %s87, %s88
      %p90 = scmp.eq.s32.totalorder %s89, 0
      %s92 = sadd.s32 %s91, 1
      %s93 = scalar_select %p90, %s91, %s92
      %p96 = pneg %p90
      %p97 = scmp.eq.s32.totalorder %s11, 3
      %p98 = por %p96, %p97
      %p99 = scmp.ne.s32.totalorder %s91, %s94
      %p100 = scmp.eq.s32.totalorder %s11, 0
      %p101 = por %p99, %p100
      %p102 = scmp.ne.s32.totalorder %s91, %s94
      %p103 = scmp.eq.s32.totalorder %s16, 3
      %p104 = por %p102, %p103
      %p105 = scmp.ne.s32.totalorder %s94, %s95
      %p106 = scmp.eq.s32.totalorder %s16, 0
      %p107 = por %p105, %p106
      %p108 = scmp.ne.s32.totalorder %s94, %s95
      %p109 = scmp.eq.s32.totalorder %s17, 3
      %p110 = por %p108, %p109
      %p112 = scmp.ne.s32.totalorder %s95, %s111
      %p113 = scmp.eq.s32.totalorder %s17, 0
      %p114 = por %p112, %p113
      %p115 = scmp.le.s32.totalorder 1, %s11
      %p116 = scmp.lt.s32.totalorder %s11, 5
      %p117 = pnand %p115, %p116
      %p118 = pneg %p117
      // Predicated region
      $region9: #{tpu_custom_call.1} parent=5 // pred_check
        _
      $region10: #{tpu_custom_call.1} parent=5 // pred_check_branch
        %120 = sbr.rel (%p117) target = $region12
      $region11: #{tpu_custom_call.1} parent=5 // pred_region
        %s121 = ssub.s32 %s11, 1
      $region12: #{tpu_custom_call.1} parent=5 // pred_fallthru
        _
      %p122 = scmp.lt.s32.totalorder %s11, 4
      // Predicated region
      $region13: #{tpu_custom_call.1} parent=5 // pred_check
        %p123 = pneg %p122
      $region14: #{tpu_custom_call.1} parent=5 // pred_check_branch
        %125 = sbr.rel (%p123) target = $region16
      $region15: #{tpu_custom_call.1} parent=5 // pred_region
        // Predicated region
        $region17: #{tpu_custom_call.1} parent=15 // pred_check
          %p126 = pneg %p45
        $region18: #{tpu_custom_call.1} parent=15 // pred_check_branch
          %128 = sbr.rel (%p126) target = $region20
        $region19: #{tpu_custom_call.1} parent=15 // pred_region
          %p129 = scmp.lt.s32.totalorder %s18, 1
          %s130 = scalar_select %p129, %s18, 1
          %p131 = scmp.lt.s32.totalorder %s19, 1
          %s132 = scalar_select %p131, %s19, 1
          %s133 = smul.addr %s130, 2
          %s134 = sadd.s32 %s132, %s133
          %s135 = smul.addr %s134, 8
          %s136 = scalar_lea.vmem %s0, %s135
        $region20: #{tpu_custom_call.1} parent=15 // pred_fallthru
          _
        // Predicated region
        $region21: #{tpu_custom_call.1} parent=15 // pred_check
          %p137 = pneg %p73
        $region22: #{tpu_custom_call.1} parent=15 // pred_check_branch
          %139 = sbr.rel (%p137) target = $region24
        $region23: #{tpu_custom_call.1} parent=15 // pred_region
          %p140 = scmp.lt.s32.totalorder %s18, 1
          %s141 = scalar_select %p140, %s18, 1
          %p142 = scmp.lt.s32.totalorder %s19, 1
          %s143 = scalar_select %p142, %s19, 1
          %s144 = smul.addr %s141, 2
          %s145 = sadd.s32 %s143, %s144
          %s146 = scalar_lea.vmem %s1, %s145
        $region24: #{tpu_custom_call.1} parent=15 // pred_fallthru
          _
      $region16: #{tpu_custom_call.1} parent=5 // pred_fallthru
        _
      %p147 = scmp.le.s32.totalorder 1, %s11
      %p148 = scmp.lt.s32.totalorder %s11, 5
      %p149 = pnand %p147, %p148
      %p150 = pneg %p149
      // Predicated region
      $region25: #{tpu_custom_call.1} parent=5 // pred_check
        _
      $region26: #{tpu_custom_call.1} parent=5 // pred_check_branch
        %152 = sbr.rel (%p149) target = $region28
      $region27: #{tpu_custom_call.1} parent=5 // pred_region
        %s153 = ssub.s32 %s11, 1
        %p154 = scmp.lt.s32.totalorder %s20, 1
        %s155 = scalar_select %p154, %s20, 1
        %p156 = scmp.lt.s32.totalorder %s21, 1
        %s157 = scalar_select %p156, %s21, 1
        %s158 = smul.addr %s155, 2
        %s159 = sadd.s32 %s157, %s158
        %s160 = smul.addr %s159, 8
        %s161 = scalar_lea.vmem %s0, %s160
        %p162 = pneg %p51
        %p163 = pneg %p48
        %p164 = scmp.lt.s32.totalorder %s20, 1
        %s165 = scalar_select %p164, %s20, 1
        %p166 = scmp.lt.s32.totalorder %s21, 1
        %s167 = scalar_select %p166, %s21, 1
        %s168 = smul.addr %s165, 2
        %s169 = sadd.s32 %s167, %s168
        %s170 = scalar_lea.vmem %s1, %s169
        %p171 = pneg %p79
        %p172 = pneg %p76
        %p173 = pneg %p107
        %p174 = pneg %p104
        %s175 = sand.u32 %s94, 1
        %s176 = scalar_lea.sflag [#allocation3], %s175
        %s177 = sand.u32 %s94, 1
        %s178 = scalar_lea.vmem [#allocation2], %s177
        %p179 = scmp.lt.s32.totalorder %s20, 1
        %s180 = scalar_select %p179, %s20, 1
        %p181 = scmp.lt.s32.totalorder %s21, 1
        %s182 = scalar_select %p181, %s21, 1
        %s183 = smul.addr %s180, 2
        %s184 = sadd.s32 %s182, %s183
        %s185 = smul.addr %s184, 8
        %s186 = scalar_lea.vmem %s0, %s185
        %p187 = scmp.lt.s32.totalorder %s20, 1
        %s188 = scalar_select %p187, %s20, 1
        %p189 = scmp.lt.s32.totalorder %s21, 1
        %s190 = scalar_select %p189, %s21, 1
        %s191 = smul.addr %s188, 2
        %s192 = sadd.s32 %s190, %s191
        %s193 = scalar_lea.vmem %s1, %s192
        %v194 = vld [vmem:[%s186] sm:$0x1f]
        %v195 = vld [vmem:[%s193] sm:$0x1]
        %v196 = vunpack.c.0.s8 %v195
        %vm197 = vcmask 1044480
        %v198 = vsel %vm197, %v194, -inf
        %v199 = vrot.slane %v198, 4
        %v200 = vmax.f32 %v198, %v199
        %v201 = vrot.slane %v200, 2
        %v202 = vmax.f32 %v200, %v201
        %v203 = vrot.slane %v202, 1
        %v204 = vmax.f32 %v202, %v203
        %v205 = vsub.f32 %v194, %v204
        %v206 = vmul.f32 %v205, 1.442695
        %v207 = vpow.pop %v206
        %v208 = vsel %vm197, %v207, 0.0
        %v209 = vrot.slane %v208, 4
        %v210 = vadd.f32 %v208, %v209
        %v211 = vrot.slane %v210, 2
        %v212 = vadd.f32 %v210, %v211
        %v213 = vrot.slane %v212, 1
        %v214 = vadd.f32 %v212, %v213
        %v215 = vrcp.pop %v214
        %v216 = vmul.f32 %v214, %v215
        %v217 = vsub.f32 2.0, %v216
        %v218 = vmul.f32 %v215, %v217
        %v219 = vlog2.pop %v214
        %v220 = vmul.f32 %v219, 0.6931472
        %v221 = vlaneseq
        %v222 = vshrl.u32 %v221, 7
        %v223 = vlaneseq
        %v224 = vshrl.u32 %v223, 7
        %v225 = vsub.s32 0, %v224
        %v226 = vrot.slane %v196, %v225
        %vm227 = vcmp.eq.s32.totalorder %v222, %v226
        %v228 = vsel %vm227, 1, 0
        %v229 = vcvt.s32.f32 %v228
        %v230 = vmul.f32 %v229, %v205
        %v231 = vsel %vm197, %v230, 0.0
        %v232 = vrot.slane %v231, 4
        %v233 = vadd.f32 %v231, %v232
        %v234 = vrot.slane %v233, 2
        %v235 = vadd.f32 %v233, %v234
        %v236 = vrot.slane %v235, 1
        %v237 = vadd.f32 %v235, %v236
        %v238 = vmul.f32 %v229, %v207
        %v239 = vsel %vm197, %v238, 0.0
        %v240 = vrot.slane %v239, 4
        %v241 = vadd.f32 %v239, %v240
        %v242 = vrot.slane %v241, 2
        %v243 = vadd.f32 %v241, %v242
        %v244 = vrot.slane %v243, 1
        %v245 = vadd.f32 %v243, %v244
        %v246 = vmul.f32 %v245, %v218
        %v247 = vsub.f32 %v237, %v220
        %v248 = vsub.f32 1.0, %v246
        %v249 = vmul.f32 %v248, %v248
        %v250 = vmul.f32 %v249, -0.5
        %v251 = vmul.f32 %v250, %v247
        %252 = vst [vmem:[%s178] sm:$0x1] %v251
        %s253 = sand.u32 %s94, 1
        %s254 = scalar_lea.sflag [#allocation3], %s253
        %s255 = sand.u32 %s94, 1
        %s256 = scalar_lea.vmem [#allocation2], %s255
        // Predicated region
        $region29: #{tpu_custom_call.1} parent=27 // pred_check
          %p257 = pneg %p104
        $region30: #{tpu_custom_call.1} parent=27 // pred_check_branch
          %259 = sbr.rel (%p257) target = $region32
        $region31: #{tpu_custom_call.1} parent=27 // pred_region
          %s261 = ssub.s32 16, 16
          %262 = vsyncadd %s254, %s261
          %s263 = smul.addr %s20, 2
          %s264 = sadd.s32 %s21, %s263
          %s265 = smul.addr %s264, 16
          %s266 = scalar_lea.hbm %s2, %s265
          %s268 = sshll.u32 %s256, 4
          %s269 = int_to_ptr.vmem [resolvable:$true] %s268
          %271 = dma.vmem_to_hbm [thread:$0]  %s269, 16, %s266, %s254
        $region32: #{tpu_custom_call.1} parent=27 // pred_fallthru
          _
      $region28: #{tpu_custom_call.1} parent=5 // pred_fallthru
        _
      %p272 = scmp.le.s32.totalorder 2, %s11
      // Predicated region
      $region33: #{tpu_custom_call.1} parent=5 // pred_check
        %p273 = pneg %p272
      $region34: #{tpu_custom_call.1} parent=5 // pred_check_branch
        %275 = sbr.rel (%p273) target = $region36
      $region35: #{tpu_custom_call.1} parent=5 // pred_region
        %s276 = ssub.s32 %s11, 2
        // Predicated region
        $region37: #{tpu_custom_call.1} parent=35 // pred_check
          %p277 = pneg %p110
        $region38: #{tpu_custom_call.1} parent=35 // pred_check_branch
          %279 = sbr.rel (%p277) target = $region40
        $region39: #{tpu_custom_call.1} parent=35 // pred_region
          %s280 = sand.u32 %s95, 1
          %s281 = scalar_lea.sflag [#allocation3], %s280
          %s282 = sand.u32 %s95, 1
          %s283 = scalar_lea.vmem [#allocation2], %s282
          %284 = dma.done %s281, 16
        $region40: #{tpu_custom_call.1} parent=35 // pred_fallthru
          _
      $region36: #{tpu_custom_call.1} parent=5 // pred_fallthru
        _
    $region6: #{tpu_custom_call.1} parent=1 // loop_footer
      %s15 = sadd.s32 1, %s11
    $region7: #{tpu_custom_call.1} parent=1 // loop_footer_branch
      %10 = sbr.rel target = $region3
    $region8: #{tpu_custom_call.1} parent=1 // loop_exit
      _
    %285 = vsyncpa [#allocation3], 1
    %s286 = scalar_lea.sflag [#allocation3], 1
    %287 = vsyncpa %s286, 1

</llo_original>
